<compile_context>
chip_gen: v7x
topology: tpu7x:2x2x1
jax: 0.10.0
libtpu: 0.0.40
codegen_flags: <defaults>
</compile_context>

<pallas_src>
import jax
import jax.numpy as jnp
from jax.experimental import pallas as pl
from jax.experimental.pallas import tpu as pltpu

IN_DIM = 416        # input features (fixed by the module)
HID_DIM = 128       # affine1 output
ACT_DIM = 5         # real number of actions
OUT_PAD = 128       # padded logit width fed to MXU / softmax
OUT_STORE = 8       # lanes actually written to HBM (>= ACT_DIM)
NEG_BIG = -1e30     # f32 bias for padded logit lanes (exp -> 0)
TM_MAX = 1024       # max batch tile (rows); ~3.5 MiB of VMEM incl. dbl-buffer


def _round_up(n, m):
    return ((n + m - 1) // m) * m


def policy_kernel(x_ref, w1_ref, b1_ref, w2_ref, b2_ref, out_ref):
    # x_ref:  [TM, 416] f32 (cast to bf16 in-kernel)
    # w1_ref: [416, 128] bf16    b1_ref: [1, 128] f32
    # w2_ref: [128, 128] bf16    b2_ref: [1, 128] f32 (padded lanes = -1e30)
    # out_ref:[TM, 8]   f32  (real probabilities in lanes 0..4, zeros in 5..7)
    x = x_ref[...].astype(w1_ref.dtype)                       # f32 -> bf16 (VPU)
    h = jnp.dot(x, w1_ref[...], preferred_element_type=jnp.float32)
    h = jnp.maximum(h + b1_ref[...], 0.0)                     # bias + ReLU
    logits = jnp.dot(h.astype(w2_ref.dtype), w2_ref[...],
                     preferred_element_type=jnp.float32) + b2_ref[...]
    # numerically-stable softmax over the 128-lane vreg; padded lanes carry a
    # -1e30 bias so they contribute exp(...) == 0 to the denominator.
    m = jnp.max(logits, axis=-1, keepdims=True)
    e = jnp.exp(logits - m)
    denom = jnp.sum(e, axis=-1, keepdims=True)
    out_ref[...] = e[:, :OUT_STORE] / denom                   # exact normalize


def prepare_params(w1, b1, w2, b2, *, compute_dtype=jnp.bfloat16):
    """One-time parameter prep (pad action head 5 -> 128, cast weights to bf16).

    w1: [416, 128], b1: [1, 128], w2: [128, 5], b2: [1, 5]  (in_features,
    out_features layout, i.e. the transpose of PyTorch nn.Linear .weight).
    """
    w1_p = jnp.asarray(w1, jnp.float32).astype(compute_dtype)
    b1_p = jnp.asarray(b1, jnp.float32).reshape(1, HID_DIM)
    w2_p = jnp.pad(jnp.asarray(w2, jnp.float32),
                   ((0, 0), (0, OUT_PAD - ACT_DIM))).astype(compute_dtype)
    b2_p = jnp.pad(jnp.asarray(b2, jnp.float32).reshape(1, ACT_DIM),
                   ((0, 0), (0, OUT_PAD - ACT_DIM)),
                   constant_values=NEG_BIG)                   # stays f32!
    return w1_p, b1_p, w2_p, b2_p


def _tile_for_batch(B):
    """Pick (tm, n_tiles) minimizing overhang; >=2 grid steps when B >= 16
    so the "parallel" batch axis can shard across v7x's two TensorCores."""
    num_tiles = max(pl.cdiv(B, TM_MAX), 2 if B >= 16 else 1)
    tm = _round_up(pl.cdiv(B, num_tiles), 8)
    return tm, pl.cdiv(B, tm)


def policy_forward(x, params):
    """x: [B, 416] f32; params: output of prepare_params.  Returns [B, 5] f32."""
    w1_p, b1_p, w2_p, b2_p = params
    B = x.shape[0]
    tm, n_tiles = _tile_for_batch(B)

    out = pl.pallas_call(
        policy_kernel,
        out_shape=jax.ShapeDtypeStruct((B, OUT_STORE), jnp.float32),
        grid=(n_tiles,),
        in_specs=[
            pl.BlockSpec((tm, IN_DIM), lambda i: (i, 0)),        # x tile (raw f32)
            pl.BlockSpec((IN_DIM, HID_DIM), lambda i: (0, 0)),   # W1 (VMEM-resident)
            pl.BlockSpec((1, HID_DIM), lambda i: (0, 0)),        # b1
            pl.BlockSpec((HID_DIM, OUT_PAD), lambda i: (0, 0)),  # W2 (VMEM-resident)
            pl.BlockSpec((1, OUT_PAD), lambda i: (0, 0)),        # b2
        ],
        out_specs=pl.BlockSpec((tm, OUT_STORE), lambda i: (i, 0)),
        compiler_params=pltpu.CompilerParams(
            dimension_semantics=("parallel",)),
    )(x, w1_p, b1_p, w2_p, b2_p)

    return out[:, :ACT_DIM]


def init_params(key):
    """Deterministic init matching nn.Linear default (uniform +/- 1/sqrt(fan_in))."""
    k1, k2, k3, k4 = jax.random.split(key, 4)
    bound1 = 1.0 / jnp.sqrt(jnp.float32(IN_DIM))
    bound2 = 1.0 / jnp.sqrt(jnp.float32(HID_DIM))
    w1 = jax.random.uniform(k1, (IN_DIM, HID_DIM), jnp.float32, -bound1, bound1)
    b1 = jax.random.uniform(k2, (1, HID_DIM), jnp.float32, -bound1, bound1)
    w2 = jax.random.uniform(k3, (HID_DIM, ACT_DIM), jnp.float32, -bound2, bound2)
    b2 = jax.random.uniform(k4, (1, ACT_DIM), jnp.float32, -bound2, bound2)
    return w1, b1, w2, b2


def reference_forward_f32(x, w1, b1, w2, b2):
    h = jnp.maximum(x @ w1 + b1, 0.0)
    return jax.nn.softmax(h @ w2 + b2, axis=-1)


def reference_forward_bf16(x, w1, b1, w2, b2):
    """Matches the kernel's bf16-input / f32-accumulate matmul precision."""
    h = jnp.dot(x.astype(jnp.bfloat16), w1.astype(jnp.bfloat16),
                preferred_element_type=jnp.float32) + b1
    h = jnp.maximum(h, 0.0)
    logits = jnp.dot(h.astype(jnp.bfloat16), w2.astype(jnp.bfloat16),
                     preferred_element_type=jnp.float32) + b2
    return jax.nn.softmax(logits, axis=-1)


if __name__ == "__main__":
    key = jax.random.PRNGKey(0)
    kx, kp = jax.random.split(key)
    w1, b1, w2, b2 = init_params(kp)
    params = prepare_params(w1, b1, w2, b2)   # one-time prep (hoisted)

    fwd = jax.jit(policy_forward)

    # Small batches: single-tile, ragged multi-tile, and even multi-tile.
    for B in (2, 37, 112):
        kb = jax.random.fold_in(kx, B)
        x = jax.random.normal(kb, (B, IN_DIM), jnp.float32)

        out = jax.block_until_ready(fwd(x, params))
        assert out.shape == (B, ACT_DIM)

        # vs full-f32 reference: loose tolerance (bf16 matmul inputs).
        ref_f32 = reference_forward_f32(x, w1, b1, w2, b2)
        assert jnp.allclose(out, ref_f32, atol=2e-2, rtol=0.0), B

        # vs precision-matched bf16 reference: tighter tolerance.
        ref_bf16 = reference_forward_bf16(x, w1, b1, w2, b2)
        assert jnp.allclose(out, ref_bf16, atol=5e-3, rtol=0.0), B

        # probabilities sum to 1 (exact divide now used for normalization).
        assert jnp.allclose(jnp.sum(out, axis=-1), 1.0, atol=1e-5), B

    print("KERNEL_OK")
</pallas_src>

<mosaic_0001>
module attributes {stable_mosaic.version = 11 : i64} {
  func.func @policy_kernel(%arg0: i32, %arg1: memref<8x416xf32, #tpu.memory_space<vmem>>, %arg2: memref<416x128xbf16, #tpu.memory_space<vmem>>, %arg3: memref<1x128xf32, #tpu.memory_space<vmem>>, %arg4: memref<128x128xbf16, #tpu.memory_space<vmem>>, %arg5: memref<1x128xf32, #tpu.memory_space<vmem>>, %arg6: memref<8x8xf32, #tpu.memory_space<vmem>>) attributes {dimension_semantics = [#tpu.dimension_semantics<parallel>], iteration_bounds = array<i64: 1>, scalar_prefetch = 0 : i64, scratch_operands = 0 : i64, tpu.core_type = #tpu.core_type<tc>, window_params = [{transform_indices = @transform_0, window_bounds = array<i64: 8, 416>}, {pipeline_mode = #tpu.pipeline_mode<synchronous>, transform_indices = @transform_1, window_bounds = array<i64: 416, 128>}, {pipeline_mode = #tpu.pipeline_mode<synchronous>, transform_indices = @transform_2, window_bounds = array<i64: 1, 128>}, {pipeline_mode = #tpu.pipeline_mode<synchronous>, transform_indices = @transform_3, window_bounds = array<i64: 128, 128>}, {pipeline_mode = #tpu.pipeline_mode<synchronous>, transform_indices = @transform_4, window_bounds = array<i64: 1, 128>}, {transform_indices = @transform_5, window_bounds = array<i64: 8, 8>}]} {
    %c0 = arith.constant 0 : index
    %c0_0 = arith.constant 0 : index
    %0 = vector.load %arg1[%c0, %c0_0] : memref<8x416xf32, #tpu.memory_space<vmem>>, vector<8x416xf32>
    %1 = arith.truncf %0 : vector<8x416xf32> to vector<8x416xbf16>
    %c0_1 = arith.constant 0 : index
    %c0_2 = arith.constant 0 : index
    %2 = vector.load %arg2[%c0_1, %c0_2] : memref<416x128xbf16, #tpu.memory_space<vmem>>, vector<416x128xbf16>
    %cst = arith.constant dense<0.000000e+00> : vector<8x128xf32>
    %3 = tpu.matmul %1, %2, %cst {dimension_numbers = #tpu.dot_dimension_numbers<[1], [0], [0], [1], [0, 0, 1, 1], [], []>} : vector<8x416xbf16>, vector<416x128xbf16>, vector<8x128xf32> -> vector<8x128xf32>
    %c0_3 = arith.constant 0 : index
    %c0_4 = arith.constant 0 : index
    %4 = vector.load %arg3[%c0_3, %c0_4] : memref<1x128xf32, #tpu.memory_space<vmem>>, vector<1x128xf32>
    %5 = vector.broadcast %4 : vector<1x128xf32> to vector<8x128xf32>
    %6 = arith.addf %3, %5 : vector<8x128xf32>
    %cst_5 = arith.constant 0.000000e+00 : f32
    %7 = vector.broadcast %cst_5 : f32 to vector<8x128xf32>
    %8 = arith.maximumf %6, %7 : vector<8x128xf32>
    %9 = arith.truncf %8 : vector<8x128xf32> to vector<8x128xbf16>
    %c0_6 = arith.constant 0 : index
    %c0_7 = arith.constant 0 : index
    %10 = vector.load %arg4[%c0_6, %c0_7] : memref<128x128xbf16, #tpu.memory_space<vmem>>, vector<128x128xbf16>
    %cst_8 = arith.constant dense<0.000000e+00> : vector<8x128xf32>
    %11 = tpu.matmul %9, %10, %cst_8 {dimension_numbers = #tpu.dot_dimension_numbers<[1], [0], [0], [1], [0, 0, 1, 1], [], []>} : vector<8x128xbf16>, vector<128x128xbf16>, vector<8x128xf32> -> vector<8x128xf32>
    %c0_9 = arith.constant 0 : index
    %c0_10 = arith.constant 0 : index
    %12 = vector.load %arg5[%c0_9, %c0_10] : memref<1x128xf32, #tpu.memory_space<vmem>>, vector<1x128xf32>
    %13 = vector.broadcast %12 : vector<1x128xf32> to vector<8x128xf32>
    %14 = arith.addf %11, %13 : vector<8x128xf32>
    %cst_11 = arith.constant dense<0xFF800000> : vector<8xf32>
    %15 = vector.multi_reduction <maximumf>, %14, %cst_11 [1] : vector<8x128xf32> to vector<8xf32>
    %16 = vector.shape_cast %15 : vector<8xf32> to vector<8x1xf32>
    %17 = vector.broadcast %16 : vector<8x1xf32> to vector<8x128xf32>
    %18 = arith.subf %14, %17 : vector<8x128xf32>
    %19 = math.exp %18 : vector<8x128xf32>
    %cst_12 = arith.constant dense<0.000000e+00> : vector<8xf32>
    %20 = vector.multi_reduction <add>, %19, %cst_12 [1] : vector<8x128xf32> to vector<8xf32>
    %21 = vector.shape_cast %20 : vector<8xf32> to vector<8x1xf32>
    %22 = vector.extract_strided_slice %19 {offsets = [0, 0], sizes = [8, 8], strides = [1, 1]} : vector<8x128xf32> to vector<8x8xf32>
    %23 = vector.broadcast %21 : vector<8x1xf32> to vector<8x8xf32>
    %24 = arith.divf %22, %23 : vector<8x8xf32>
    %c0_13 = arith.constant 0 : index
    %c0_14 = arith.constant 0 : index
    %25 = vector.load %arg6[%c0_13, %c0_14] : memref<8x8xf32, #tpu.memory_space<vmem>>, vector<8x8xf32>
    tpu.vector_store %arg6[%c0_13, %c0_14], %24 {strides = array<i32>} : memref<8x8xf32, #tpu.memory_space<vmem>>, vector<8x8xf32>,
    return
  }
  func.func @transform_0(%arg0: i32) -> (i32, i32) {
    %c0_i32 = arith.constant 0 : i32
    %c0_i32_0 = arith.constant 0 : i32
    return %arg0, %c0_i32 : i32, i32
  }
  func.func @transform_1(%arg0: i32) -> (i32, i32) {
    %c0_i32 = arith.constant 0 : i32
    %c0_i32_0 = arith.constant 0 : i32
    %c0_i32_1 = arith.constant 0 : i32
    return %c0_i32, %c0_i32_0 : i32, i32
  }
  func.func @transform_2(%arg0: i32) -> (i32, i32) {
    %c0_i32 = arith.constant 0 : i32
    %c0_i32_0 = arith.constant 0 : i32
    %c0_i32_1 = arith.constant 0 : i32
    return %c0_i32, %c0_i32_0 : i32, i32
  }
  func.func @transform_3(%arg0: i32) -> (i32, i32) {
    %c0_i32 = arith.constant 0 : i32
    %c0_i32_0 = arith.constant 0 : i32
    %c0_i32_1 = arith.constant 0 : i32
    return %c0_i32, %c0_i32_0 : i32, i32
  }
  func.func @transform_4(%arg0: i32) -> (i32, i32) {
    %c0_i32 = arith.constant 0 : i32
    %c0_i32_0 = arith.constant 0 : i32
    %c0_i32_1 = arith.constant 0 : i32
    return %c0_i32, %c0_i32_0 : i32, i32
  }
  func.func @transform_5(%arg0: i32) -> (i32, i32) {
    %c0_i32 = arith.constant 0 : i32
    %c0_i32_0 = arith.constant 0 : i32
    return %arg0, %c0_i32 : i32, i32
  }
}

</mosaic_0001>

<llo_original>
// kernel: policy_forward.1
$region0: #{policy_forward.1}
  #allocation0 [shape = 'u32[]', space=smem, size = 0x4, offset = 0x4, fixed_abs, tag = 'smem constant byte address 0x4 - core index']
  #allocation1 [shape = 'u32[144,128]{1,0:T(1,128)}', space=vmem, size = 0x12000, scoped, tag = 'internal scratch']
  %s0 = inlined_call_operand.hbm [shape: f32[2,416], index: 0, kind: input, shape index: {}]
  %s1 = inlined_call_operand.hbm [shape: bf16[416,128], index: 1, kind: input, shape index: {}]
  %s2 = inlined_call_operand.vmem [shape: f32[1,128], index: 2, kind: input, shape index: {}]
  %s3 = inlined_call_operand.hbm [shape: bf16[128,128], index: 3, kind: input, shape index: {}]
  %s4 = inlined_call_operand.vmem [shape: f32[1,128], index: 4, kind: input, shape index: {}]
  %s5 = inlined_call_operand.hbm [shape: f32[2,8], index: 5, kind: output, shape index: {}]
  %s6 = sld [smem:[#allocation0]]
  $region42: #{policy_forward.1} parent=0
    _
  %s8 = ssub.s32 1, %s6
  %s9 = scalar_select 0, %s8, %s6
  $region1: #{policy_forward.1} parent=0
    #allocation2 [shape = 'u8[16384]{0}', space=vmem, size = 0x4000, scoped, tag = 'input window, operand 0, single buffered']
    #allocation3 [shape = 's32[1]{0}', space=sflag, size = 0x4, scoped, tag = 'scoped memory for policy_forward.1']
    #allocation4 [shape = 's32[1]{0}', space=sflag, size = 0x4, scoped, tag = 'scoped memory for policy_forward.1']
    #allocation5 [shape = 'u8[106496]{0}', space=vmem, size = 0x1a000, scoped, tag = 'input window, operand 1, single buffered']
    #allocation6 [shape = 's32[1]{0}', space=sflag, size = 0x4, scoped, tag = 'scoped memory for policy_forward.1']
    #allocation7 [shape = 'u8[32768]{0}', space=vmem, size = 0x8000, scoped, tag = 'input window, operand 3, single buffered']
    #allocation8 [shape = 'u8[4096]{0}', space=vmem, size = 0x1000, scoped, tag = 'output window, operand 0, single buffered']
    %10 = vsyncpa [#allocation3], 0
    %11 = vsyncpa [#allocation6], 0
    %12 = vsyncpa [#allocation4], 0
    // Predicated region
    $region2: #{policy_forward.1} parent=1 // pred_check
      _
    $region3: #{policy_forward.1} parent=1 // pred_check_branch
      %14 = sbr.rel (0) target = $region5
    $region4: #{policy_forward.1} parent=1 // pred_region
      %s16 = ssub.s32 512, 128
      %17 = vsyncadd [#allocation3], %s16
      %s18 = sshll.u32 [#allocation2], 4
      %s19 = int_to_ptr.vmem [resolvable:$true] %s18
      %24 = dma.hbm_to_vmem [thread:$0]  %s0, 128, %s19, [#allocation3], 128, 128, 8
    $region5: #{policy_forward.1} parent=1 // pred_fallthru
      _
    // Predicated region
    $region6: #{policy_forward.1} parent=1 // pred_check
      _
    $region7: #{policy_forward.1} parent=1 // pred_check_branch
      %26 = sbr.rel (0) target = $region9
    $region8: #{policy_forward.1} parent=1 // pred_region
      %s28 = ssub.s32 3328, 3328
      %29 = vsyncadd [#allocation6], %s28
      %s30 = sshll.u32 [#allocation5], 4
      %s31 = int_to_ptr.vmem [resolvable:$true] %s30
      %36 = dma.hbm_to_vmem [thread:$0]  %s1, 3328, %s31, [#allocation6], 64, 64, 4
    $region9: #{policy_forward.1} parent=1 // pred_fallthru
      _
    // Predicated region
    $region10: #{policy_forward.1} parent=1 // pred_check
      _
    $region11: #{policy_forward.1} parent=1 // pred_check_branch
      %38 = sbr.rel (0) target = $region13
    $region12: #{policy_forward.1} parent=1 // pred_region
      _
    $region13: #{policy_forward.1} parent=1 // pred_fallthru
      _
    // Predicated region
    $region14: #{policy_forward.1} parent=1 // pred_check
      _
    $region15: #{policy_forward.1} parent=1 // pred_check_branch
      %40 = sbr.rel (0) target = $region17
    $region16: #{policy_forward.1} parent=1 // pred_region
      %s42 = ssub.s32 1024, 1024
      %43 = vsyncadd [#allocation6], %s42
      %s44 = sshll.u32 [#allocation7], 4
      %s45 = int_to_ptr.vmem [resolvable:$true] %s44
      %50 = dma.hbm_to_vmem [thread:$0]  %s3, 1024, %s45, [#allocation6], 64, 64, 4
    $region17: #{policy_forward.1} parent=1 // pred_fallthru
      _
    // Predicated region
    $region18: #{policy_forward.1} parent=1 // pred_check
      _
    $region19: #{policy_forward.1} parent=1 // pred_check_branch
      %52 = sbr.rel (0) target = $region21
    $region20: #{policy_forward.1} parent=1 // pred_region
      _
    $region21: #{policy_forward.1} parent=1 // pred_fallthru
      _
    // Predicated region
    $region22: #{policy_forward.1} parent=1 // pred_check
      _
    $region23: #{policy_forward.1} parent=1 // pred_check_branch
      %54 = sbr.rel (0) target = $region25
    $region24: #{policy_forward.1} parent=1 // pred_region
      %55 = dma.done [#allocation3], 512
    $region25: #{policy_forward.1} parent=1 // pred_fallthru
      _
    // Predicated region
    $region26: #{policy_forward.1} parent=1 // pred_check
      _
    $region27: #{policy_forward.1} parent=1 // pred_check_branch
      %57 = sbr.rel (0) target = $region29
    $region28: #{policy_forward.1} parent=1 // pred_region
      %58 = dma.done [#allocation6], 3328
    $region29: #{policy_forward.1} parent=1 // pred_fallthru
      _
    // Predicated region
    $region30: #{policy_forward.1} parent=1 // pred_check
      _
    $region31: #{policy_forward.1} parent=1 // pred_check_branch
      %60 = sbr.rel (0) target = $region33
    $region32: #{policy_forward.1} parent=1 // pred_region
      %61 = dma.done [#allocation6], 1024
    $region33: #{policy_forward.1} parent=1 // pred_fallthru
      _
    %v63 = vld [vmem:[#allocation2] sm:$0xff]
    %v64 = vld [vmem:[#allocation2 + $0x8] sm:$0xff]
    %v65 = vld [vmem:[#allocation2 + $0x10] sm:$0xff]
    %v66 = vld [vmem:[#allocation2 + $0x18] sm:$0xff]
    %v71 = vcombine.low %v63, %v64
    %v72 = vcombine.high %v63, %v64
    %v73 = vcombine.low %v65, %v66
    %v74 = vcombine.high %v65, %v66
    %v76 = vunpack.c.l.s4 1983009808
    %v77 = vunpack.c.0.s8 %v76
    %v78 = vlaneseq
    %v79 = vshrl.u32 %v78, 7
    %v80 = vsub.s32 %v77, %v79
    %v81 = vrot.slane %v71, %v80
    %v83 = vunpack.c.l.s4 1983009808
    %v84 = vunpack.c.0.s8 %v83
    %v85 = vlaneseq
    %v86 = vshrl.u32 %v85, 7
    %v87 = vsub.s32 %v84, %v86
    %v88 = vrot.slane %v72, %v87
    %v90 = vunpack.c.l.s4 1983009808
    %v91 = vunpack.c.0.s8 %v90
    %v92 = vlaneseq
    %v93 = vshrl.u32 %v92, 7
    %v94 = vsub.s32 %v91, %v93
    %v95 = vrot.slane %v73, %v94
    %v97 = vunpack.c.l.s4 1983009808
    %v98 = vunpack.c.0.s8 %v97
    %v99 = vlaneseq
    %v100 = vshrl.u32 %v99, 7
    %v101 = vsub.s32 %v98, %v100
    %v102 = vrot.slane %v74, %v101
    %v103 = vcombine.low %v81, %v95
    %v104 = vcombine.high %v81, %v95
    %v105 = vcombine.low %v88, %v102
    %v106 = vcombine.high %v88, %v102
    %v111 = vpack.c.bf16 %v103, %v103
    %v112 = vpack.c.bf16 %v104, %v104
    %v113 = vpack.c.bf16 %v105, %v105
    %v114 = vpack.c.bf16 %v106, %v106
    %v115 = vld [vmem:[#allocation5] sm:$0xf]
    %v116 = vld [vmem:[#allocation5 + $0x4] sm:$0xf]
    %v117 = vld [vmem:[#allocation5 + $0x8] sm:$0xf]
    %v118 = vld [vmem:[#allocation5 + $0xc] sm:$0xf]
    %v119 = vld [vmem:[#allocation5 + $0x10] sm:$0xf]
    %v120 = vld [vmem:[#allocation5 + $0x14] sm:$0xf]
    %v121 = vld [vmem:[#allocation5 + $0x18] sm:$0xf]
    %v122 = vld [vmem:[#allocation5 + $0x1c] sm:$0xf]
    %v123 = vld [vmem:[#allocation5 + $0x20] sm:$0xf]
    %v124 = vld [vmem:[#allocation5 + $0x24] sm:$0xf]
    %v125 = vld [vmem:[#allocation5 + $0x28] sm:$0xf]
    %v126 = vld [vmem:[#allocation5 + $0x2c] sm:$0xf]
    %v127 = vld [vmem:[#allocation5 + $0x30] sm:$0xf]
    %v128 = vld [vmem:[#allocation5 + $0x34] sm:$0xf]
    %v129 = vld [vmem:[#allocation5 + $0x38] sm:$0xf]
    %v130 = vld [vmem:[#allocation5 + $0x3c] sm:$0xf]
    %v131 = vld [vmem:[#allocation5 + $0x40] sm:$0xf]
    %v132 = vld [vmem:[#allocation5 + $0x44] sm:$0xf]
    %v133 = vld [vmem:[#allocation5 + $0x48] sm:$0xf]
    %v134 = vld [vmem:[#allocation5 + $0x4c] sm:$0xf]
    %v135 = vld [vmem:[#allocation5 + $0x50] sm:$0xf]
    %v136 = vld [vmem:[#allocation5 + $0x54] sm:$0xf]
    %v137 = vld [vmem:[#allocation5 + $0x58] sm:$0xf]
    %v138 = vld [vmem:[#allocation5 + $0x5c] sm:$0xf]
    %v139 = vld [vmem:[#allocation5 + $0x60] sm:$0xf]
    %v140 = vld [vmem:[#allocation5 + $0x64] sm:$0xf]
    %v141 = vld [vmem:[#allocation5 + $0x68] sm:$0xf]
    %v142 = vld [vmem:[#allocation5 + $0x6c] sm:$0xf]
    %v143 = vld [vmem:[#allocation5 + $0x70] sm:$0xf]
    %v144 = vld [vmem:[#allocation5 + $0x74] sm:$0xf]
    %v145 = vld [vmem:[#allocation5 + $0x78] sm:$0xf]
    %v146 = vld [vmem:[#allocation5 + $0x7c] sm:$0xf]
    %v147 = vld [vmem:[#allocation5 + $0x80] sm:$0xf]
    %v148 = vld [vmem:[#allocation5 + $0x84] sm:$0xf]
    %v149 = vld [vmem:[#allocation5 + $0x88] sm:$0xf]
    %v150 = vld [vmem:[#allocation5 + $0x8c] sm:$0xf]
    %v151 = vld [vmem:[#allocation5 + $0x90] sm:$0xf]
    %v152 = vld [vmem:[#allocation5 + $0x94] sm:$0xf]
    %v153 = vld [vmem:[#allocation5 + $0x98] sm:$0xf]
    %v154 = vld [vmem:[#allocation5 + $0x9c] sm:$0xf]
    %v155 = vld [vmem:[#allocation5 + $0xa0] sm:$0xf]
    %v156 = vld [vmem:[#allocation5 + $0xa4] sm:$0xf]
    %v157 = vld [vmem:[#allocation5 + $0xa8] sm:$0xf]
    %v158 = vld [vmem:[#allocation5 + $0xac] sm:$0xf]
    %v159 = vld [vmem:[#allocation5 + $0xb0] sm:$0xf]
    %v160 = vld [vmem:[#allocation5 + $0xb4] sm:$0xf]
    %v161 = vld [vmem:[#allocation5 + $0xb8] sm:$0xf]
    %v162 = vld [vmem:[#allocation5 + $0xbc] sm:$0xf]
    %v163 = vld [vmem:[#allocation5 + $0xc0] sm:$0xf]
    %v164 = vld [vmem:[#allocation5 + $0xc4] sm:$0xf]
    %v165 = vld [vmem:[#allocation5 + $0xc8] sm:$0xf]
    %v166 = vld [vmem:[#allocation5 + $0xcc] sm:$0xf]
    %v167 = vld [vmem:[%s2] sm:$0x1]
    %v169 = vlaneseq
    %v170 = vshrl.u32 %v169, 7
    %v171 = vsub.s32 0, %v170
    %v172 = vrot.slane %v167, %v171
    %v226 = vunpack.c.l.b16 %v115
    %v227 = vunpack.c.l.b16 %v116
    %v228 = vunpack.c.l.b16 %v117
    %v229 = vunpack.c.l.b16 %v118
    %v230 = vunpack.c.l.b16 %v119
    %v231 = vunpack.c.l.b16 %v120
    %v232 = vunpack.c.l.b16 %v121
    %v233 = vunpack.c.l.b16 %v122
    %v234 = vunpack.c.l.b16 %v123
    %v235 = vunpack.c.l.b16 %v124
    %v236 = vunpack.c.l.b16 %v125
    %v237 = vunpack.c.l.b16 %v126
    %v238 = vunpack.c.l.b16 %v127
    %v239 = vunpack.c.l.b16 %v128
    %v240 = vunpack.c.l.b16 %v129
    %v241 = vunpack.c.l.b16 %v130
    %v242 = vunpack.c.l.b16 %v131
    %v243 = vunpack.c.l.b16 %v132
    %v244 = vunpack.c.l.b16 %v133
    %v245 = vunpack.c.l.b16 %v134
    %v246 = vunpack.c.l.b16 %v135
    %v247 = vunpack.c.l.b16 %v136
    %v248 = vunpack.c.l.b16 %v137
    %v249 = vunpack.c.l.b16 %v138
    %v250 = vunpack.c.l.b16 %v139
    %v251 = vunpack.c.l.b16 %v140
    %v252 = vunpack.c.l.b16 %v141
    %v253 = vunpack.c.l.b16 %v142
    %v254 = vunpack.c.l.b16 %v143
    %v255 = vunpack.c.l.b16 %v144
    %v256 = vunpack.c.l.b16 %v145
    %v257 = vunpack.c.l.b16 %v146
    %v258 = vunpack.c.l.b16 %v147
    %v259 = vunpack.c.l.b16 %v148
    %v260 = vunpack.c.l.b16 %v149
    %v261 = vunpack.c.l.b16 %v150
    %v262 = vunpack.c.l.b16 %v151
    %v263 = vunpack.c.l.b16 %v152
    %v264 = vunpack.c.l.b16 %v153
    %v265 = vunpack.c.l.b16 %v154
    %v266 = vunpack.c.l.b16 %v155
    %v267 = vunpack.c.l.b16 %v156
    %v268 = vunpack.c.l.b16 %v157
    %v269 = vunpack.c.l.b16 %v158
    %v270 = vunpack.c.l.b16 %v159
    %v271 = vunpack.c.l.b16 %v160
    %v272 = vunpack.c.l.b16 %v161
    %v273 = vunpack.c.l.b16 %v162
    %v274 = vunpack.c.l.b16 %v163
    %v275 = vunpack.c.l.b16 %v164
    %v276 = vunpack.c.l.b16 %v165
    %v277 = vunpack.c.l.b16 %v166
    %v278 = vpack.c.b16 %v227, %v226
    %v279 = vpack.c.b16 %v229, %v228
    %v280 = vpack.c.b16 %v231, %v230
    %v281 = vpack.c.b16 %v233, %v232
    %v282 = vpack.c.b16 %v235, %v234
    %v283 = vpack.c.b16 %v237, %v236
    %v284 = vpack.c.b16 %v239, %v238
    %v285 = vpack.c.b16 %v241, %v240
    %v286 = vpack.c.b16 %v243, %v242
    %v287 = vpack.c.b16 %v245, %v244
    %v288 = vpack.c.b16 %v247, %v246
    %v289 = vpack.c.b16 %v249, %v248
    %v290 = vpack.c.b16 %v251, %v250
    %v291 = vpack.c.b16 %v253, %v252
    %v292 = vpack.c.b16 %v255, %v254
    %v293 = vpack.c.b16 %v257, %v256
    %v294 = vpack.c.b16 %v259, %v258
    %v295 = vpack.c.b16 %v261, %v260
    %v296 = vpack.c.b16 %v263, %v262
    %v297 = vpack.c.b16 %v265, %v264
    %v298 = vpack.c.b16 %v267, %v266
    %v299 = vpack.c.b16 %v269, %v268
    %v300 = vpack.c.b16 %v271, %v270
    %v301 = vpack.c.b16 %v273, %v272
    %v302 = vpack.c.b16 %v275, %v274
    %v303 = vpack.c.b16 %v277, %v276
    %vm330 = vcmask 261120
    %v332 = vsel %vm330, %v114, 0
    %334 = vmatprep.subr.bf16.mxu0 0
    %335 = vmatpush1.bf16.msra.mxu0 %v278
    %336 = vmatprep.subr.bf16.mxu0 0
    %337 = vmatpush1.bf16.msra.mxu0 %v279
    %338 = vmatprep.subr.bf16.mxu0 0
    %339 = vmatpush1.bf16.msra.mxu0 %v280
    %340 = vmatprep.subr.bf16.mxu0 0
    %341 = vmatpush1.bf16.msra.mxu0 %v281
    %342 = vmatprep.subr.bf16.mxu0 0
    %343 = vmatpush1.bf16.msra.mxu0 %v282
    %344 = vmatprep.subr.bf16.mxu0 0
    %345 = vmatpush1.bf16.msra.mxu0 %v283
    %346 = vmatprep.subr.bf16.mxu0 0
    %347 = vmatpush1.bf16.msra.mxu0 %v284
    %348 = vmatprep.subr.bf16.mxu0 0
    %349 = vmatpush1.bf16.msra.mxu0 %v285
    %350 = vmatprep.subr.bf16.mxu0 0
    %351 = vmatpush1.bf16.msra.mxu0 %v286
    %352 = vmatprep.subr.bf16.mxu0 0
    %353 = vmatpush1.bf16.msra.mxu0 %v287
    %354 = vmatprep.subr.bf16.mxu0 0
    %355 = vmatpush1.bf16.msra.mxu0 %v288
    %356 = vmatprep.subr.bf16.mxu0 0
    %357 = vmatpush1.bf16.msra.mxu0 %v289
    %358 = vmatprep.subr.bf16.mxu0 0
    %359 = vmatpush1.bf16.msra.mxu0 %v290
    %360 = vmatprep.subr.bf16.mxu0 0
    %361 = vmatpush1.bf16.msra.mxu0 %v291
    %362 = vmatprep.subr.bf16.mxu0 0
    %363 = vmatpush1.bf16.msra.mxu0 %v292
    %364 = vmatprep.subr.bf16.mxu0 0
    %365 = vmatpush1.bf16.msra.mxu0 %v293
    %366 = vmatprep.mubr.bf16.mxu0 %v112
    %367 = vmatmul.mubr.bf16.gmra.mrb[0].mxu0 %v111
    %v368 = vpop.f32.mrb[0].mxu0
    %v369 = vadd.f32 %v172, %v368
    %v370 = vpop.f32.mrb[0].mxu0
    %v371 = vpop.f32.mrb[0].mxu0
    %v372 = vpop.f32.mrb[0].mxu0
    %373 = vdwg.mxu0
    %374 = vmatprep.subr.bf16.mxu0 0
    %375 = vmatpush1.bf16.msra.mxu0 %v294
    %376 = vmatprep.subr.bf16.mxu0 0
    %377 = vmatpush1.bf16.msra.mxu0 %v295
    %378 = vmatprep.subr.bf16.mxu0 0
    %379 = vmatpush1.bf16.msra.mxu0 %v296
    %380 = vmatprep.subr.bf16.mxu0 0
    %381 = vmatpush1.bf16.msra.mxu0 %v297
    %382 = vmatprep.subr.bf16.mxu0 0
    %383 = vmatpush1.bf16.msra.mxu0 %v298
    %384 = vmatprep.subr.bf16.mxu0 0
    %385 = vmatpush1.bf16.msra.mxu0 %v299
    %386 = vmatprep.subr.bf16.mxu0 0
    %387 = vmatpush1.bf16.msra.mxu0 %v300
    %388 = vmatprep.subr.bf16.mxu0 0
    %389 = vmatpush1.bf16.msra.mxu0 %v301
    %390 = vmatprep.subr.bf16.mxu0 0
    %391 = vmatpush1.bf16.msra.mxu0 %v302
    %392 = vmatprep.subr.bf16.mxu0 0
    %393 = vmatpush1.bf16.msra.mxu0 %v303
    %394 = vmatprep.subr.bf16.mxu0 0
    %395 = vmatpush1.bf16.msra.mxu0 0
    %396 = vmatprep.subr.bf16.mxu0 0
    %397 = vmatpush1.bf16.msra.mxu0 0
    %398 = vmatprep.subr.bf16.mxu0 0
    %399 = vmatpush1.bf16.msra.mxu0 0
    %400 = vmatprep.subr.bf16.mxu0 0
    %401 = vmatpush1.bf16.msra.mxu0 0
    %402 = vmatprep.subr.bf16.mxu0 0
    %403 = vmatpush1.bf16.msra.mxu0 0
    %404 = vmatprep.subr.bf16.mxu0 0
    %405 = vmatpush1.bf16.msra.mxu0 0
    %406 = vmatprep.mubr.bf16.mxu0 %v332
    %407 = vmatmul.mubr.bf16.gmra.mrb[0].mxu0 %v113
    %v408 = vpop.f32.mrb[0].mxu0
    %v409 = vadd.f32 %v369, %v408
    %v410 = vpop.f32.mrb[0].mxu0
    %v411 = vpop.f32.mrb[0].mxu0
    %v412 = vpop.f32.mrb[0].mxu0
    %413 = vdwg.mxu0
    %v414 = vmax.f32 %v409, 0.0
    %v415 = vpack.c.bf16 %v414, %v414
    %v416 = vld [vmem:[#allocation7] sm:$0xf]
    %v417 = vld [vmem:[#allocation7 + $0x4] sm:$0xf]
    %v418 = vld [vmem:[#allocation7 + $0x8] sm:$0xf]
    %v419 = vld [vmem:[#allocation7 + $0xc] sm:$0xf]
    %v420 = vld [vmem:[#allocation7 + $0x10] sm:$0xf]
    %v421 = vld [vmem:[#allocation7 + $0x14] sm:$0xf]
    %v422 = vld [vmem:[#allocation7 + $0x18] sm:$0xf]
    %v423 = vld [vmem:[#allocation7 + $0x1c] sm:$0xf]
    %v424 = vld [vmem:[#allocation7 + $0x20] sm:$0xf]
    %v425 = vld [vmem:[#allocation7 + $0x24] sm:$0xf]
    %v426 = vld [vmem:[#allocation7 + $0x28] sm:$0xf]
    %v427 = vld [vmem:[#allocation7 + $0x2c] sm:$0xf]
    %v428 = vld [vmem:[#allocation7 + $0x30] sm:$0xf]
    %v429 = vld [vmem:[#allocation7 + $0x34] sm:$0xf]
    %v430 = vld [vmem:[#allocation7 + $0x38] sm:$0xf]
    %v431 = vld [vmem:[#allocation7 + $0x3c] sm:$0xf]
    %v432 = vld [vmem:[%s4] sm:$0x1]
    %v434 = vlaneseq
    %v435 = vshrl.u32 %v434, 7
    %v436 = vsub.s32 0, %v435
    %v437 = vrot.slane %v432, %v436
    %v455 = vunpack.c.l.b16 %v416
    %v456 = vunpack.c.l.b16 %v417
    %v457 = vunpack.c.l.b16 %v418
    %v458 = vunpack.c.l.b16 %v419
    %v459 = vunpack.c.l.b16 %v420
    %v460 = vunpack.c.l.b16 %v421
    %v461 = vunpack.c.l.b16 %v422
    %v462 = vunpack.c.l.b16 %v423
    %v463 = vunpack.c.l.b16 %v424
    %v464 = vunpack.c.l.b16 %v425
    %v465 = vunpack.c.l.b16 %v426
    %v466 = vunpack.c.l.b16 %v427
    %v467 = vunpack.c.l.b16 %v428
    %v468 = vunpack.c.l.b16 %v429
    %v469 = vunpack.c.l.b16 %v430
    %v470 = vunpack.c.l.b16 %v431
    %v471 = vpack.c.b16 %v456, %v455
    %v472 = vpack.c.b16 %v458, %v457
    %v473 = vpack.c.b16 %v460, %v459
    %v474 = vpack.c.b16 %v462, %v461
    %v475 = vpack.c.b16 %v464, %v463
    %v476 = vpack.c.b16 %v466, %v465
    %v477 = vpack.c.b16 %v468, %v467
    %v478 = vpack.c.b16 %v470, %v469
    %487 = vmatprep.subr.bf16.mxu0 0
    %488 = vmatpush1.bf16.msra.mxu0 %v471
    %489 = vmatprep.subr.bf16.mxu0 0
    %490 = vmatpush1.bf16.msra.mxu0 %v472
    %491 = vmatprep.subr.bf16.mxu0 0
    %492 = vmatpush1.bf16.msra.mxu0 %v473
    %493 = vmatprep.subr.bf16.mxu0 0
    %494 = vmatpush1.bf16.msra.mxu0 %v474
    %495 = vmatprep.subr.bf16.mxu0 0
    %496 = vmatpush1.bf16.msra.mxu0 %v475
    %497 = vmatprep.subr.bf16.mxu0 0
    %498 = vmatpush1.bf16.msra.mxu0 %v476
    %499 = vmatprep.subr.bf16.mxu0 0
    %500 = vmatpush1.bf16.msra.mxu0 %v477
    %501 = vmatprep.subr.bf16.mxu0 0
    %502 = vmatpush1.bf16.msra.mxu0 %v478
    %503 = vmatprep.subr.bf16.mxu0 0
    %504 = vmatpush1.bf16.msra.mxu0 0
    %505 = vmatprep.subr.bf16.mxu0 0
    %506 = vmatpush1.bf16.msra.mxu0 0
    %507 = vmatprep.subr.bf16.mxu0 0
    %508 = vmatpush1.bf16.msra.mxu0 0
    %509 = vmatprep.subr.bf16.mxu0 0
    %510 = vmatpush1.bf16.msra.mxu0 0
    %511 = vmatprep.subr.bf16.mxu0 0
    %512 = vmatpush1.bf16.msra.mxu0 0
    %513 = vmatprep.subr.bf16.mxu0 0
    %514 = vmatpush1.bf16.msra.mxu0 0
    %515 = vmatprep.subr.bf16.mxu0 0
    %516 = vmatpush1.bf16.msra.mxu0 0
    %517 = vmatprep.subr.bf16.mxu0 0
    %518 = vmatpush1.bf16.msra.mxu0 0
    %519 = vmatprep.mubr.bf16.mxu0 0
    %520 = vmatmul.mubr.bf16.gmra.mrb[0].mxu0 %v415
    %v521 = vpop.f32.mrb[0].mxu0
    %v522 = vadd.f32 %v437, %v521
    %v523 = vpop.f32.mrb[0].mxu0
    %v524 = vpop.f32.mrb[0].mxu0
    %v525 = vpop.f32.mrb[0].mxu0
    %526 = vdwg.mxu0
    %527 = vmax.xlane.f32.xlu0 %v522
    %v528 = vpop.xlane.xlu0 %527
    %v529 = vsub.f32 %v522, %v528
    %v530 = vmul.f32 %v529, 1.442695
    %v531 = vpow.pop %v530
    %532 = vadd.xlane.f32.xlu0 %v531
    %v533 = vpop.xlane.xlu0 %532
    %v534 = vrcp.pop %v533
    %v535 = vmul.f32 %v531, %v534
    %vm536 = vcmask 64512
    %537 = vst.msk [vmem:[#allocation8] sm:$0xff] %vm536, %v535
    // Predicated region
    $region34: #{policy_forward.1} parent=1 // pred_check
      _
    $region35: #{policy_forward.1} parent=1 // pred_check_branch
      %539 = sbr.rel (0) target = $region37
    $region36: #{policy_forward.1} parent=1 // pred_region
      %s541 = ssub.s32 128, 32
      %542 = vsyncadd [#allocation4], %s541
      %s543 = sshll.u32 [#allocation8], 4
      %s544 = int_to_ptr.vmem [resolvable:$true] %s543
      %549 = dma.vmem_to_hbm [thread:$0]  %s544, 32, %s5, [#allocation4], 32, 32, 2
    $region37: #{policy_forward.1} parent=1 // pred_fallthru
      _
    // Predicated region
    $region38: #{policy_forward.1} parent=1 // pred_check
      _
    $region39: #{policy_forward.1} parent=1 // pred_check_branch
      %551 = sbr.rel (0) target = $region41
    $region40: #{policy_forward.1} parent=1 // pred_region
      %552 = dma.done [#allocation4], 128
    $region41: #{policy_forward.1} parent=1 // pred_fallthru
      _
    %553 = vsyncpa [#allocation3], 1
    %554 = vsyncpa [#allocation6], 1
    %555 = vsyncpa [#allocation4], 1

</llo_original>
